<compile_context>
chip_gen: v5e
topology: v5e:2x2
jax: 0.10.0
libtpu: 0.0.40
codegen_flags: <defaults>
</compile_context>

<pallas_src>
import functools

import jax
import jax.numpy as jnp
from jax import lax
from jax.experimental import pallas as pl
from jax.experimental.pallas import tpu as pltpu


def _round_up(x, m):
    return (x + m - 1) // m * m


def _class_embed_kernel(x_ref, w1_ref, b1_ref, w2_ref, b2_ref, o_ref, *, is_labels):
    """One batch tile: x (TB, NC) or labels (TB, 1) -> out (TB, E)."""
    w1 = w1_ref[...]                       # (NC, E), VMEM-resident across grid steps
    if is_labels:
        labels = x_ref[...]                # (TB, 1) int32
        nc = w1.shape[0]
        # Build the one-hot in-kernel: iota-compare is a few VPU ops, no HBM traffic.
        x = (lax.broadcasted_iota(jnp.int32, (labels.shape[0], nc), 1)
             == labels).astype(jnp.float32)
    else:
        x = x_ref[...].astype(jnp.float32)  # (TB, NC)

    # fc1 + bias + ReLU   (single tiny MXU pass, f32 accumulation)
    h = jnp.dot(x, w1, preferred_element_type=jnp.float32) + b1_ref[...]
    h = jnp.maximum(h, 0.0)
    # fc2 + bias
    out = jnp.dot(h, w2_ref[...], preferred_element_type=jnp.float32) + b2_ref[...]
    o_ref[...] = out.astype(o_ref.dtype)


@functools.partial(jax.jit, static_argnames=("num_classes", "block_b"))
def class_embedding_forward(c, w1, b1, w2, b2, *, num_classes, block_b=256):
    """Pallas implementation of ClassEmbedding.forward.

    c : int labels (B,)  -> one-hot built inside the kernel
        or float tensor (B, num_classes) -> used directly.
    w1: (num_classes, E)   (pre-transposed vs. torch Linear weight)
    b1: (1, E)
    w2: (E, E)
    b2: (1, E)
    """
    E = w2.shape[1]
    is_labels = jnp.issubdtype(c.dtype, jnp.integer)

    if is_labels:
        B = c.shape[0]
        x = c.astype(jnp.int32).reshape(B, 1)      # (B, 1) labels
        feat = 1
    else:
        B = c.shape[0]
        x = c.astype(jnp.float32)                  # (B, NC)
        feat = num_classes

    # Batch tile: multiple of 8 sublanes, capped at block_b (256 fills a
    # v6e/v7x MXU pass; pass block_b=128 on v5e).
    tb = min(block_b, _round_up(B, 8))
    bp = _round_up(B, tb)
    if bp != B:
        x = jnp.pad(x, ((0, bp - B), (0, 0)))      # pad rows (label 0 / zeros: harmless)

    grid = (bp // tb,)

    act_spec = pl.BlockSpec((tb, feat), lambda i: (i, 0))     # per-step activation tile
    out_spec = pl.BlockSpec((tb, E), lambda i: (i, 0))
    const2 = lambda shape: pl.BlockSpec(shape, lambda i: (0, 0))  # VMEM-resident params

    out = pl.pallas_call(
        functools.partial(_class_embed_kernel, is_labels=is_labels),
        out_shape=jax.ShapeDtypeStruct((bp, E), jnp.float32),
        grid=grid,
        in_specs=[
            act_spec,
            const2(w1.shape),
            const2(b1.shape),
            const2(w2.shape),
            const2(b2.shape),
        ],
        out_specs=out_spec,
        compiler_params=pltpu.CompilerParams(
            dimension_semantics=("parallel",)),
    )(x, w1, b1, w2, b2)

    return out[:B]


def init_params(key, num_classes, class_embed_size):
    """Deterministic parameter init matching torch.nn.Linear shapes
    (stored transposed: (in, out))."""
    k1, k2, k3, k4 = jax.random.split(key, 4)
    bound1 = 1.0 / jnp.sqrt(num_classes)
    bound2 = 1.0 / jnp.sqrt(class_embed_size)
    w1 = jax.random.uniform(k1, (num_classes, class_embed_size),
                            minval=-bound1, maxval=bound1, dtype=jnp.float32)
    b1 = jax.random.uniform(k2, (1, class_embed_size),
                            minval=-bound1, maxval=bound1, dtype=jnp.float32)
    w2 = jax.random.uniform(k3, (class_embed_size, class_embed_size),
                            minval=-bound2, maxval=bound2, dtype=jnp.float32)
    b2 = jax.random.uniform(k4, (1, class_embed_size),
                            minval=-bound2, maxval=bound2, dtype=jnp.float32)
    return w1, b1, w2, b2


def _ref_forward(x, w1, b1, w2, b2):
    return jnp.maximum(x @ w1 + b1, 0.0) @ w2 + b2


if __name__ == "__main__":
    num_classes = 16
    class_embed_size = 32
    batch = 8

    key = jax.random.PRNGKey(0)
    pkey, ckey, fkey, bkey = jax.random.split(key, 4)
    w1, b1, w2, b2 = init_params(pkey, num_classes, class_embed_size)

    # --- Integer class-label path (the F.one_hot branch) ---
    c = jax.random.randint(ckey, (batch,), 0, num_classes, dtype=jnp.int32)
    out = jax.block_until_ready(
        class_embedding_forward(c, w1, b1, w2, b2, num_classes=num_classes))
    ref = _ref_forward(jax.nn.one_hot(c, num_classes, dtype=jnp.float32),
                       w1, b1, w2, b2)
    assert out.shape == (batch, class_embed_size)
    assert jnp.allclose(out, ref, atol=1e-5, rtol=1e-5)

    # --- Float-input path (the FloatTensor branch) ---
    c_float = jax.random.normal(fkey, (batch, num_classes), dtype=jnp.float32)
    out_f = jax.block_until_ready(
        class_embedding_forward(c_float, w1, b1, w2, b2, num_classes=num_classes))
    ref_f = _ref_forward(c_float, w1, b1, w2, b2)
    assert jnp.allclose(out_f, ref_f, atol=1e-5, rtol=1e-5)

    # --- Larger batch: exercises the batch grid + padding path ---
    big_b = 300  # -> tile 256, padded to 512, grid=(2,)
    c_big = jax.random.randint(bkey, (big_b,), 0, num_classes, dtype=jnp.int32)
    out_big = jax.block_until_ready(
        class_embedding_forward(c_big, w1, b1, w2, b2, num_classes=num_classes))
    ref_big = _ref_forward(jax.nn.one_hot(c_big, num_classes, dtype=jnp.float32),
                           w1, b1, w2, b2)
    assert out_big.shape == (big_b, class_embed_size)
    assert jnp.allclose(out_big, ref_big, atol=1e-5, rtol=1e-5)

    print("KERNEL_OK")
</pallas_src>

<mosaic_0001>
module attributes {stable_mosaic.version = 11 : i64} {
  func.func @_class_embed_kernel(%arg0: i32, %arg1: memref<8x1xi32, #tpu.memory_space<vmem>>, %arg2: memref<16x32xf32, #tpu.memory_space<vmem>>, %arg3: memref<1x32xf32, #tpu.memory_space<vmem>>, %arg4: memref<32x32xf32, #tpu.memory_space<vmem>>, %arg5: memref<1x32xf32, #tpu.memory_space<vmem>>, %arg6: memref<8x32xf32, #tpu.memory_space<vmem>>) attributes {dimension_semantics = [#tpu.dimension_semantics<parallel>], iteration_bounds = array<i64: 1>, scalar_prefetch = 0 : i64, scratch_operands = 0 : i64, tpu.core_type = #tpu.core_type<tc>, window_params = [{transform_indices = @transform_0, window_bounds = array<i64: 8, 1>}, {pipeline_mode = #tpu.pipeline_mode<synchronous>, transform_indices = @transform_1, window_bounds = array<i64: 16, 32>}, {pipeline_mode = #tpu.pipeline_mode<synchronous>, transform_indices = @transform_2, window_bounds = array<i64: 1, 32>}, {pipeline_mode = #tpu.pipeline_mode<synchronous>, transform_indices = @transform_3, window_bounds = array<i64: 32, 32>}, {pipeline_mode = #tpu.pipeline_mode<synchronous>, transform_indices = @transform_4, window_bounds = array<i64: 1, 32>}, {transform_indices = @transform_5, window_bounds = array<i64: 8, 32>}]} {
    %c0 = arith.constant 0 : index
    %c0_0 = arith.constant 0 : index
    %0 = vector.load %arg2[%c0, %c0_0] : memref<16x32xf32, #tpu.memory_space<vmem>>, vector<16x32xf32>
    %c0_1 = arith.constant 0 : index
    %c0_2 = arith.constant 0 : index
    %1 = vector.load %arg1[%c0_1, %c0_2] : memref<8x1xi32, #tpu.memory_space<vmem>>, vector<8x1xi32>
    %2 = tpu.iota {dimensions = array<i32: 1>} : vector<8x16xi32>
    %3 = vector.broadcast %1 : vector<8x1xi32> to vector<8x16xi32>
    %4 = arith.cmpi eq, %2, %3 : vector<8x16xi32>
    %5 = arith.extui %4 : vector<8x16xi1> to vector<8x16xi32>
    %6 = arith.sitofp %5 : vector<8x16xi32> to vector<8x16xf32>
    %cst = arith.constant dense<0.000000e+00> : vector<8x32xf32>
    %7 = tpu.matmul %6, %0, %cst {dimension_numbers = #tpu.dot_dimension_numbers<[1], [0], [0], [1], [0, 0, 1, 1], [], []>} : vector<8x16xf32>, vector<16x32xf32>, vector<8x32xf32> -> vector<8x32xf32>
    %c0_3 = arith.constant 0 : index
    %c0_4 = arith.constant 0 : index
    %8 = vector.load %arg3[%c0_3, %c0_4] : memref<1x32xf32, #tpu.memory_space<vmem>>, vector<1x32xf32>
    %9 = vector.broadcast %8 : vector<1x32xf32> to vector<8x32xf32>
    %10 = arith.addf %7, %9 : vector<8x32xf32>
    %cst_5 = arith.constant 0.000000e+00 : f32
    %11 = vector.broadcast %cst_5 : f32 to vector<8x32xf32>
    %12 = arith.maximumf %10, %11 : vector<8x32xf32>
    %c0_6 = arith.constant 0 : index
    %c0_7 = arith.constant 0 : index
    %13 = vector.load %arg4[%c0_6, %c0_7] : memref<32x32xf32, #tpu.memory_space<vmem>>, vector<32x32xf32>
    %cst_8 = arith.constant dense<0.000000e+00> : vector<8x32xf32>
    %14 = tpu.matmul %12, %13, %cst_8 {dimension_numbers = #tpu.dot_dimension_numbers<[1], [0], [0], [1], [0, 0, 1, 1], [], []>} : vector<8x32xf32>, vector<32x32xf32>, vector<8x32xf32> -> vector<8x32xf32>
    %c0_9 = arith.constant 0 : index
    %c0_10 = arith.constant 0 : index
    %15 = vector.load %arg5[%c0_9, %c0_10] : memref<1x32xf32, #tpu.memory_space<vmem>>, vector<1x32xf32>
    %16 = vector.broadcast %15 : vector<1x32xf32> to vector<8x32xf32>
    %17 = arith.addf %14, %16 : vector<8x32xf32>
    %c0_11 = arith.constant 0 : index
    %c0_12 = arith.constant 0 : index
    %18 = vector.load %arg6[%c0_11, %c0_12] : memref<8x32xf32, #tpu.memory_space<vmem>>, vector<8x32xf32>
    tpu.vector_store %arg6[%c0_11, %c0_12], %17 {strides = array<i32>} : memref<8x32xf32, #tpu.memory_space<vmem>>, vector<8x32xf32>,
    return
  }
  func.func @transform_0(%arg0: i32) -> (i32, i32) {
    %c0_i32 = arith.constant 0 : i32
    %c0_i32_0 = arith.constant 0 : i32
    return %arg0, %c0_i32 : i32, i32
  }
  func.func @transform_1(%arg0: i32) -> (i32, i32) {
    %c0_i32 = arith.constant 0 : i32
    %c0_i32_0 = arith.constant 0 : i32
    %c0_i32_1 = arith.constant 0 : i32
    return %c0_i32, %c0_i32_0 : i32, i32
  }
  func.func @transform_2(%arg0: i32) -> (i32, i32) {
    %c0_i32 = arith.constant 0 : i32
    %c0_i32_0 = arith.constant 0 : i32
    %c0_i32_1 = arith.constant 0 : i32
    return %c0_i32, %c0_i32_0 : i32, i32
  }
  func.func @transform_3(%arg0: i32) -> (i32, i32) {
    %c0_i32 = arith.constant 0 : i32
    %c0_i32_0 = arith.constant 0 : i32
    %c0_i32_1 = arith.constant 0 : i32
    return %c0_i32, %c0_i32_0 : i32, i32
  }
  func.func @transform_4(%arg0: i32) -> (i32, i32) {
    %c0_i32 = arith.constant 0 : i32
    %c0_i32_0 = arith.constant 0 : i32
    %c0_i32_1 = arith.constant 0 : i32
    return %c0_i32, %c0_i32_0 : i32, i32
  }
  func.func @transform_5(%arg0: i32) -> (i32, i32) {
    %c0_i32 = arith.constant 0 : i32
    %c0_i32_0 = arith.constant 0 : i32
    return %arg0, %c0_i32 : i32, i32
  }
}

</mosaic_0001>

<llo_original>
// kernel: class_embedding_forward.1
$region0: #{class_embedding_forward.1}
  #allocation0 [shape = 'u32[]', space=smem, size = 0x4, offset = 0x4, fixed_abs, tag = 'smem constant byte address 0x4 - core index']
  #allocation1 [shape = 'u32[72,128]{1,0:T(1,128)}', space=vmem, size = 0x9000, scoped, tag = 'internal scratch']
  %s0 = inlined_call_operand.vmem [shape: s32[8,1], index: 0, kind: input, shape index: {}]
  %s1 = inlined_call_operand.hbm [shape: f32[16,32], index: 1, kind: input, shape index: {}]
  %s2 = inlined_call_operand.vmem [shape: f32[1,32], index: 2, kind: input, shape index: {}]
  %s3 = inlined_call_operand.hbm [shape: f32[32,32], index: 3, kind: input, shape index: {}]
  %s4 = inlined_call_operand.vmem [shape: f32[1,32], index: 4, kind: input, shape index: {}]
  %s5 = inlined_call_operand.hbm [shape: f32[8,32], index: 5, kind: output, shape index: {}]
  %s6 = sld [smem:[#allocation0]]
  $region38: #{class_embedding_forward.1} parent=0
    _
  %s8 = ssub.s32 1, %s6
  %s9 = scalar_select 0, %s8, %s6
  $region1: #{class_embedding_forward.1} parent=0
    #allocation2 [shape = 'u8[8192]{0}', space=vmem, size = 0x2000, scoped, tag = 'input window, operand 1, single buffered']
    #allocation3 [shape = 's32[1]{0}', space=sflag, size = 0x4, scoped, tag = 'scoped memory for class_embedding_forward.1']
    #allocation4 [shape = 's32[1]{0}', space=sflag, size = 0x4, scoped, tag = 'scoped memory for class_embedding_forward.1']
    #allocation5 [shape = 'u8[16384]{0}', space=vmem, size = 0x4000, scoped, tag = 'input window, operand 3, single buffered']
    #allocation6 [shape = 's32[1]{0}', space=sflag, size = 0x4, scoped, tag = 'scoped memory for class_embedding_forward.1']
    #allocation7 [shape = 'u8[4096]{0}', space=vmem, size = 0x1000, scoped, tag = 'output window, operand 0, single buffered']
    %10 = vsyncpa [#allocation3], 0
    %11 = vsyncpa [#allocation6], 0
    %12 = vsyncpa [#allocation4], 0
    // Predicated region
    $region2: #{class_embedding_forward.1} parent=1 // pred_check
      _
    $region3: #{class_embedding_forward.1} parent=1 // pred_check_branch
      %14 = sbr.rel (0) target = $region5
    $region4: #{class_embedding_forward.1} parent=1 // pred_region
      _
    $region5: #{class_embedding_forward.1} parent=1 // pred_fallthru
      _
    // Predicated region
    $region6: #{class_embedding_forward.1} parent=1 // pred_check
      _
    $region7: #{class_embedding_forward.1} parent=1 // pred_check_branch
      %16 = sbr.rel (0) target = $region9
    $region8: #{class_embedding_forward.1} parent=1 // pred_region
      %18 = vsyncadd [#allocation3], 0
      %s19 = sshll.u32 %s1, 4
      %s20 = int_to_ptr.hbm [resolvable:$true] %s19
      %s21 = sshll.u32 [#allocation2], 4
      %s22 = int_to_ptr.vmem [resolvable:$true] %s21
      %27 = dma.hbm_to_vmem [thread:$0]  %s20, 256, %s22, [#allocation3], 128, 128, 8
    $region9: #{class_embedding_forward.1} parent=1 // pred_fallthru
      _
    // Predicated region
    $region10: #{class_embedding_forward.1} parent=1 // pred_check
      _
    $region11: #{class_embedding_forward.1} parent=1 // pred_check_branch
      %29 = sbr.rel (0) target = $region13
    $region12: #{class_embedding_forward.1} parent=1 // pred_region
      _
    $region13: #{class_embedding_forward.1} parent=1 // pred_fallthru
      _
    // Predicated region
    $region14: #{class_embedding_forward.1} parent=1 // pred_check
      _
    $region15: #{class_embedding_forward.1} parent=1 // pred_check_branch
      %31 = sbr.rel (0) target = $region17
    $region16: #{class_embedding_forward.1} parent=1 // pred_region
      %33 = vsyncadd [#allocation6], 0
      %s34 = sshll.u32 %s3, 4
      %s35 = int_to_ptr.hbm [resolvable:$true] %s34
      %s36 = sshll.u32 [#allocation5], 4
      %s37 = int_to_ptr.vmem [resolvable:$true] %s36
      %42 = dma.hbm_to_vmem [thread:$0]  %s35, 512, %s37, [#allocation6], 128, 128, 8
    $region17: #{class_embedding_forward.1} parent=1 // pred_fallthru
      _
    // Predicated region
    $region18: #{class_embedding_forward.1} parent=1 // pred_check
      _
    $region19: #{class_embedding_forward.1} parent=1 // pred_check_branch
      %44 = sbr.rel (0) target = $region21
    $region20: #{class_embedding_forward.1} parent=1 // pred_region
      _
    $region21: #{class_embedding_forward.1} parent=1 // pred_fallthru
      _
    // Predicated region
    $region22: #{class_embedding_forward.1} parent=1 // pred_check
      _
    $region23: #{class_embedding_forward.1} parent=1 // pred_check_branch
      %46 = sbr.rel (0) target = $region25
    $region24: #{class_embedding_forward.1} parent=1 // pred_region
      %48 = dma.done [#allocation3], 256
    $region25: #{class_embedding_forward.1} parent=1 // pred_fallthru
      _
    // Predicated region
    $region26: #{class_embedding_forward.1} parent=1 // pred_check
      _
    $region27: #{class_embedding_forward.1} parent=1 // pred_check_branch
      %50 = sbr.rel (0) target = $region29
    $region28: #{class_embedding_forward.1} parent=1 // pred_region
      %52 = dma.done [#allocation6], 512
    $region29: #{class_embedding_forward.1} parent=1 // pred_fallthru
      _
    %v53 = vld [vmem:[#allocation2] sm:$0xff]
    %v54 = vld [vmem:[#allocation2 + $0x8] sm:$0xff]
    %v55 = vld [vmem:[%s0] sm:$0xff]
    %v56 = vlaneseq
    %v57 = vand.u32 %v56, 127
    %58 = vset.pattern.permute.xlu0 0
    %59 = vperm.xlu0 %58, %v55
    %v60 = vpop.permute.xlu0 %59
    %vm61 = vcmp.eq.s32.totalorder %v57, %v60
    %v62 = vsel %vm61, 1, 0
    %v63 = vcvt.s32.f32 %v62
    %v64 = vld [vmem:[%s2] sm:$0x1]
    %v66 = vperm.slane %v64, 0
    %vm68 = vcmask 130048
    %v70 = vsel %vm68, %v63, 0
    %72 = vmatpush.msra.mxu0 0.0
    %73 = vmatpush.msra.mxu0 0.0
    %74 = vmatpush.msra.mxu0 0.0
    %75 = vmatpush.msra.mxu0 0.0
    %76 = vmatpush.msra.mxu0 0.0
    %77 = vmatpush.msra.mxu0 0.0
    %78 = vmatpush.msra.mxu0 0.0
    %79 = vmatpush.msra.mxu0 0.0
    %80 = vmatpush.msra.mxu0 0.0
    %81 = vmatpush.msra.mxu0 0.0
    %82 = vmatpush.msra.mxu0 0.0
    %83 = vmatpush.msra.mxu0 0.0
    %84 = vmatpush.msra.mxu0 0.0
    %85 = vmatpush.msra.mxu0 0.0
    %86 = vmatpush.msra.mxu0 %v54
    %87 = vmatpush.msra.mxu0 %v53
    %88 = vmatmul.f32.gmra.mxu0 %v70
    %v89 = vpop.f32.mrf.mxu0
    %v90 = vadd.f32 %v66, %v89
    %91 = vdwg.mxu0
    %v92 = vmax.f32 %v90, 0.0
    %v93 = vld [vmem:[#allocation5] sm:$0xff]
    %v94 = vld [vmem:[#allocation5 + $0x8] sm:$0xff]
    %v95 = vld [vmem:[#allocation5 + $0x10] sm:$0xff]
    %v96 = vld [vmem:[#allocation5 + $0x18] sm:$0xff]
    %v97 = vld [vmem:[%s4] sm:$0x1]
    %v99 = vperm.slane %v97, 0
    %vm101 = vcmask 261120
    %v103 = vsel %vm101, %v92, 0
    %105 = vmatpush.msra.mxu0 0.0
    %106 = vmatpush.msra.mxu0 0.0
    %107 = vmatpush.msra.mxu0 0.0
    %108 = vmatpush.msra.mxu0 0.0
    %109 = vmatpush.msra.mxu0 0.0
    %110 = vmatpush.msra.mxu0 0.0
    %111 = vmatpush.msra.mxu0 0.0
    %112 = vmatpush.msra.mxu0 0.0
    %113 = vmatpush.msra.mxu0 0.0
    %114 = vmatpush.msra.mxu0 0.0
    %115 = vmatpush.msra.mxu0 0.0
    %116 = vmatpush.msra.mxu0 0.0
    %117 = vmatpush.msra.mxu0 %v96
    %118 = vmatpush.msra.mxu0 %v95
    %119 = vmatpush.msra.mxu0 %v94
    %120 = vmatpush.msra.mxu0 %v93
    %121 = vmatmul.f32.gmra.mxu0 %v103
    %v122 = vpop.f32.mrf.mxu0
    %v123 = vadd.f32 %v99, %v122
    %124 = vdwg.mxu0
    %125 = vst.msk [vmem:[#allocation7] sm:$0xff] %vm101, %v123
    // Predicated region
    $region30: #{class_embedding_forward.1} parent=1 // pred_check
      _
    $region31: #{class_embedding_forward.1} parent=1 // pred_check_branch
      %127 = sbr.rel (0) target = $region33
    $region32: #{class_embedding_forward.1} parent=1 // pred_region
      %129 = vsyncadd [#allocation4], 0
      %s131 = sshll.u32 [#allocation7], 4
      %s132 = int_to_ptr.vmem [resolvable:$true] %s131
      %s133 = sshll.u32 %s5, 4
      %s134 = int_to_ptr.hbm [resolvable:$true] %s133
      %136 = dma.vmem_to_hbm [thread:$0]  %s132, 128, %s134, [#allocation4]
    $region33: #{class_embedding_forward.1} parent=1 // pred_fallthru
      _
    // Predicated region
    $region34: #{class_embedding_forward.1} parent=1 // pred_check
      _
    $region35: #{class_embedding_forward.1} parent=1 // pred_check_branch
      %138 = sbr.rel (0) target = $region37
    $region36: #{class_embedding_forward.1} parent=1 // pred_region
      %140 = dma.done [#allocation4], 128
    $region37: #{class_embedding_forward.1} parent=1 // pred_fallthru
      _
    %141 = vsyncpa [#allocation3], 1
    %142 = vsyncpa [#allocation6], 1
    %143 = vsyncpa [#allocation4], 1

</llo_original>
